<compile_context>
chip_gen: v7x
topology: tpu7x:2x2x1
jax: 0.10.0
libtpu: 0.0.40
codegen_flags: <defaults>
</compile_context>

<pallas_src>
import jax
import jax.numpy as jnp
from jax.experimental import pallas as pl
from jax.experimental.pallas import tpu as pltpu


# ------------------------------ kernels ------------------------------------


def _lc_kernel_seq_lanes(x_ref, s_ref, b_ref, o_ref):
    """Output (TB, TC, Lp): sequence length on lanes.
    x_ref: (TB, Lp) VMEM, s_ref: (TC, 1) VMEM, b_ref: (1, 1) SMEM."""
    x = x_ref[...].astype(jnp.float32)           # (TB, Lp)
    s = s_ref[...].astype(jnp.float32)           # (TC, 1) = rowsum(W) per channel
    bt = b_ref[0, 0]                             # scalar  = sum(Bias)
    # rank-1 outer product + constant: pure VPU broadcast multiply-add
    o_ref[...] = (x[:, None, :] * s[None, :, :] + bt).astype(o_ref.dtype)


def _lc_kernel_chan_lanes(x_ref, s_ref, b_ref, o_ref):
    """Output (TB, Lp, TC): channels on lanes (lane-dense when Lp is small).
    x_ref: (TB, Lp) VMEM, s_ref: (1, TC) VMEM, b_ref: (1, 1) SMEM."""
    x = x_ref[...].astype(jnp.float32)           # (TB, Lp)
    s = s_ref[...].astype(jnp.float32)           # (1, TC)
    bt = b_ref[0, 0]
    o_ref[...] = (x[:, :, None] * s[None, :, :] + bt).astype(o_ref.dtype)


# --------------------------- tiling heuristics ------------------------------


def _tpu_vmem_bytes():
    """Physical VMEM per core; conservative default if the query fails."""
    try:
        return int(pltpu.get_tpu_info().vmem_capacity_bytes)
    except Exception:
        return 64 << 20            # v7x per-TensorCore size: safe everywhere


def _aligned_divisors(n, align):
    """Divisors d of n (descending) that are layout-legal block extents:
    either the full extent or a multiple of `align` (8 sublanes / 128 lanes)."""
    return [d for d in range(n, 0, -1) if n % d == 0 and (d == n or d % align == 0)]


def _pick_tiles(B, C, Lp, out_itemsize, budget_bytes, tc_align):
    """Largest (TB, TC) whose double-buffered output block fits `budget_bytes`,
    preferring >= 2 grid steps (keeps both v7x TensorCores fed) as long as the
    per-step block stays >= 512 KiB (DMA-efficient)."""
    tb_opts = _aligned_divisors(B, 8)
    tc_opts = _aligned_divisors(C, tc_align)
    best_any = best_multi = smallest = None     # (elems, tb, tc)
    for tb in tb_opts:
        for tc in tc_opts:
            elems = tb * tc * Lp
            cand = (elems, tb, tc)
            if smallest is None or elems < smallest[0]:
                smallest = cand
            if 2 * elems * out_itemsize > budget_bytes:   # double-buffered block
                continue
            if best_any is None or elems > best_any[0]:
                best_any = cand
            if (B // tb) * (C // tc) >= 2 and (best_multi is None or elems > best_multi[0]):
                best_multi = cand
    if best_any is None:
        # TODO(synk): Lp-axis tiling for extreme C*Lp; fall back to smallest legal block.
        return smallest[1], smallest[2]
    if best_multi is not None and best_multi[0] * out_itemsize >= (512 << 10):
        return best_multi[1], best_multi[2]
    return best_any[1], best_any[2]


# ------------------------------- wrapper ------------------------------------


def locally_connected_forward(x, weight, bias, *, d_model, kernel_size):
    """x: (B, L, 1), weight: (C, d_model, 1), bias: (C, 1) or None.
    Returns (B, C, L + d_model % kernel_size, 1) in x.dtype."""
    assert x.ndim == 3 and x.shape[-1] == 1
    B, L, _ = x.shape
    C, D, _ = weight.shape
    assert D == d_model
    # TODO(synk): tuple d_model variant (LC_Weight (C, d0, d1)) not implemented.

    pad = d_model % kernel_size                  # zero_padding on dim -2
    Lp = L + pad
    if Lp == 1:
        # TODO(synk): degenerate x.size(-1)==1 nn.Unfold branch (padded length 1) not implemented.
        raise NotImplementedError("unfold branch only reachable for padded length 1")

    out_dtype = x.dtype
    out_itemsize = x.dtype.itemsize

    # Hoisted reductions (run once, outside the grid), kept in f32.
    w_sum = jnp.sum(weight[:, :, 0].astype(jnp.float32), axis=1)        # (C,)
    if bias is not None:
        # Reference broadcast of Bias (C,1) against (..., d_model, Lp) needs C == d_model.
        assert C == D, "bias broadcast in the reference code requires out_channels == d_model"
        bias_total = jnp.sum(bias.astype(jnp.float32)).reshape(1, 1)    # (1, 1) SMEM scalar
    else:
        bias_total = jnp.zeros((1, 1), jnp.float32)

    # pad + drop trailing singleton in one shot: (B, L, 1) -> (B, Lp); dtype preserved.
    x2 = jnp.pad(x[:, :, 0], ((0, 0), (0, pad)))

    # Output layout: keep Lp (usually the big axis) on lanes, unless Lp is small
    # and C is lane-aligned, in which case a channels-last slab gives unmasked
    # full-lane stores (a downstream consumer can absorb that layout).
    channels_last = (Lp < 128) and (C % 128 == 0)

    phys_vmem = _tpu_vmem_bytes()
    budget = phys_vmem // 4                      # for the double-buffered output block
    vmem_limit = phys_vmem // 2                  # 64 MiB on v5e/v6e, 32 MiB on v7x

    tc_align = 128 if channels_last else 8
    TB, TC = _pick_tiles(B, C, Lp, out_itemsize, budget, tc_align)
    grid = (B // TB, C // TC)

    x_spec = pl.BlockSpec((TB, Lp), lambda b, c: (b, 0))
    bias_spec = pl.BlockSpec(memory_space=pltpu.MemorySpace.SMEM)

    if channels_last:
        kernel = _lc_kernel_chan_lanes
        s_arr = w_sum.reshape(1, C)
        s_spec = pl.BlockSpec((1, TC), lambda b, c: (0, c))
        out_shape = jax.ShapeDtypeStruct((B, Lp, C), out_dtype)
        out_spec = pl.BlockSpec((TB, Lp, TC), lambda b, c: (b, 0, c))
    else:
        kernel = _lc_kernel_seq_lanes
        s_arr = w_sum.reshape(C, 1)
        s_spec = pl.BlockSpec((TC, 1), lambda b, c: (c, 0))
        out_shape = jax.ShapeDtypeStruct((B, C, Lp), out_dtype)
        out_spec = pl.BlockSpec((TB, TC, Lp), lambda b, c: (b, c, 0))

    bytes_accessed = (B * Lp * out_itemsize          # x read
                      + C * 4 + 4                    # rowsum(W) + bias scalar
                      + B * C * Lp * out_itemsize)   # output write (dominant)
    cost = pl.CostEstimate(flops=2 * B * C * Lp, transcendentals=0,
                           bytes_accessed=bytes_accessed)

    out = pl.pallas_call(
        kernel,
        out_shape=out_shape,
        grid=grid,
        in_specs=[x_spec, s_spec, bias_spec],
        out_specs=out_spec,
        compiler_params=pltpu.CompilerParams(
            dimension_semantics=("parallel", "parallel"),
            vmem_limit_bytes=vmem_limit,
        ),
        cost_estimate=cost,
    )(x2, s_arr, bias_total)

    if channels_last:
        # (B, Lp, C) -> (B, C, Lp, 1). A consumer that accepts channels-last
        # output can skip this transpose entirely.
        return jnp.transpose(out, (0, 2, 1))[:, :, :, None]
    # (B, C, Lp) -> (B, C, Lp, 1): contiguous, free.
    return out[:, :, :, None]


# -------------------------------- test --------------------------------------


if __name__ == "__main__":
    key = jax.random.PRNGKey(0)
    kx, kw, kb, kx2, kw2 = jax.random.split(key, 5)

    # --- Test 1: float32, with bias, zero-padding path, Lp-on-lanes layout ---
    B, L = 2, 16
    d_model = 16
    out_channels = 16      # reference bias broadcast requires out_channels == d_model
    kernel_size = 5        # pad = 16 % 5 = 1  ->  Lp = 17

    x = jax.random.normal(kx, (B, L, 1), dtype=jnp.float32)
    weight = jax.random.normal(kw, (out_channels, d_model, 1), dtype=jnp.float32)  # LC_Weight
    bias = jax.random.normal(kb, (out_channels, 1), dtype=jnp.float32)             # LC_Bias

    out = locally_connected_forward(x, weight, bias,
                                    d_model=d_model, kernel_size=kernel_size)
    out = jax.block_until_ready(out)

    # plain-JAX reference of the literal PyTorch forward
    pad = d_model % kernel_size
    x_p = jnp.pad(x, ((0, 0), (0, pad), (0, 0)))
    xb = x_p[:, :, 0]                                    # (B, Lp)
    w0 = weight[:, :, 0]                                 # (C, D)
    b0 = bias[:, 0]                                      # broadcast along the d_model axis
    y = w0[None, :, :, None] * xb[:, None, None, :] + b0[None, None, :, None]  # (B,C,D,Lp)
    ref = y.sum(axis=2)[:, :, :, None]                   # (B, C, Lp, 1)

    assert out.shape == ref.shape == (B, out_channels, L + pad, 1)
    assert out.dtype == x.dtype
    assert jnp.allclose(out, ref, rtol=1e-5, atol=1e-4)

    # --- Test 2: bfloat16, no bias, channels-last (lane-dense) output path ---
    B2, L2, d2, C2, ks2 = 2, 8, 8, 128, 3                # pad = 8 % 3 = 2 -> Lp = 10
    x_bf = jax.random.normal(kx2, (B2, L2, 1), dtype=jnp.float32).astype(jnp.bfloat16)
    w2 = jax.random.normal(kw2, (C2, d2, 1), dtype=jnp.float32)

    out2 = locally_connected_forward(x_bf, w2, None, d_model=d2, kernel_size=ks2)
    out2 = jax.block_until_ready(out2)

    pad2 = d2 % ks2
    xb2 = jnp.pad(x_bf[:, :, 0].astype(jnp.float32), ((0, 0), (0, pad2)))   # (B2, Lp2)
    ref2 = (xb2[:, None, :] * jnp.sum(w2[:, :, 0], axis=1)[None, :, None])[:, :, :, None]

    assert out2.shape == ref2.shape == (B2, C2, L2 + pad2, 1)
    assert out2.dtype == jnp.bfloat16
    assert jnp.allclose(out2.astype(jnp.float32), ref2, rtol=2e-2, atol=1e-1)

    print("KERNEL_OK")
</pallas_src>

<mosaic_0001>
module attributes {stable_mosaic.version = 11 : i64} {
  func.func @_lc_kernel_seq_lanes(%arg0: i32, %arg1: i32, %arg2: memref<2x17xf32, #tpu.memory_space<vmem>>, %arg3: memref<16x1xf32, #tpu.memory_space<vmem>>, %arg4: memref<1x1xf32, #tpu.memory_space<smem>>, %arg5: memref<2x16x17xf32, #tpu.memory_space<vmem>>) attributes {dimension_semantics = [#tpu.dimension_semantics<parallel>, #tpu.dimension_semantics<parallel>], iteration_bounds = array<i64: 1, 1>, scalar_prefetch = 0 : i64, scratch_operands = 0 : i64, tpu.core_type = #tpu.core_type<tc>, window_params = [{transform_indices = @transform_0, window_bounds = array<i64: 2, 17>}, {transform_indices = @transform_1, window_bounds = array<i64: 16, 1>}, {transform_indices = @transform_2, window_bounds = array<i64: 1, 1>}, {transform_indices = @transform_3, window_bounds = array<i64: 2, 16, 17>}]} {
    %c0 = arith.constant 0 : index
    %c0_0 = arith.constant 0 : index
    %0 = vector.load %arg2[%c0, %c0_0] : memref<2x17xf32, #tpu.memory_space<vmem>>, vector<2x17xf32>
    %c0_1 = arith.constant 0 : index
    %c0_2 = arith.constant 0 : index
    %1 = vector.load %arg3[%c0_1, %c0_2] : memref<16x1xf32, #tpu.memory_space<vmem>>, vector<16x1xf32>
    %c0_3 = arith.constant 0 : index
    %c0_4 = arith.constant 0 : index
    %2 = memref.load %arg4[%c0_3, %c0_4] : memref<1x1xf32, #tpu.memory_space<smem>>
    %3 = vector.shape_cast %0 : vector<2x17xf32> to vector<2x1x17xf32>
    %4 = vector.shape_cast %1 : vector<16x1xf32> to vector<1x16x1xf32>
    %5 = vector.broadcast %3 : vector<2x1x17xf32> to vector<2x16x17xf32>
    %6 = vector.broadcast %4 : vector<1x16x1xf32> to vector<2x16x17xf32>
    %7 = arith.mulf %5, %6 : vector<2x16x17xf32>
    %8 = vector.broadcast %2 : f32 to vector<2x16x17xf32>
    %9 = arith.addf %7, %8 : vector<2x16x17xf32>
    %c0_5 = arith.constant 0 : index
    %c0_6 = arith.constant 0 : index
    %c0_7 = arith.constant 0 : index
    %10 = vector.load %arg5[%c0_5, %c0_6, %c0_7] : memref<2x16x17xf32, #tpu.memory_space<vmem>>, vector<2x16x17xf32>
    tpu.vector_store %arg5[%c0_5, %c0_6, %c0_7], %9 {strides = array<i32>} : memref<2x16x17xf32, #tpu.memory_space<vmem>>, vector<2x16x17xf32>,
    return
  }
  func.func @transform_0(%arg0: i32, %arg1: i32) -> (i32, i32) {
    %c0_i32 = arith.constant 0 : i32
    %c0_i32_0 = arith.constant 0 : i32
    return %arg0, %c0_i32 : i32, i32
  }
  func.func @transform_1(%arg0: i32, %arg1: i32) -> (i32, i32) {
    %c0_i32 = arith.constant 0 : i32
    %c0_i32_0 = arith.constant 0 : i32
    return %arg1, %c0_i32 : i32, i32
  }
  func.func @transform_2(%arg0: i32, %arg1: i32) -> (i32, i32) {
    %c0_i32 = arith.constant 0 : i32
    %c0_i32_0 = arith.constant 0 : i32
    %c0_i32_1 = arith.constant 0 : i32
    return %c0_i32, %c0_i32_0 : i32, i32
  }
  func.func @transform_3(%arg0: i32, %arg1: i32) -> (i32, i32, i32) {
    %c0_i32 = arith.constant 0 : i32
    %c0_i32_0 = arith.constant 0 : i32
    return %arg0, %arg1, %c0_i32 : i32, i32, i32
  }
}

</mosaic_0001>

<llo_original>
// kernel: tpu_custom_call.1
$region0: #{tpu_custom_call.1}
  #allocation0 [shape = 'u32[]', space=smem, size = 0x4, offset = 0x4, fixed_abs, tag = 'smem constant byte address 0x4 - core index']
  #allocation1 [shape = 'u32[144,128]{1,0:T(1,128)}', space=vmem, size = 0x12000, scoped, tag = 'internal scratch']
  #allocation2 [shape = 'f32[1,1]{1,0:T(1,128)S(6)}', space=smem, size = 0x200, scoped, tag = 'scoped memory for tpu_custom_call.1']
  %s0 = inlined_call_operand.vmem [shape: f32[2,17], index: 0, kind: input, shape index: {}]
  %s1 = inlined_call_operand.vmem [shape: f32[16,1], index: 1, kind: input, shape index: {}]
  %s2 = inlined_call_operand.<no memory space> [shape: f32[1,1], index: 2, kind: input, shape index: {}]
  %s3 = inlined_call_operand.hbm [shape: f32[2,16,17], index: 3, kind: output, shape index: {}]
  %s4 = sld [smem:[#allocation0]]
  $region22: #{tpu_custom_call.1} parent=0
    _
  %s6 = ssub.s32 1, %s4
  %s7 = scalar_select 0, %s6, %s4
  %8 = sst [smem:[#allocation2]] %s2
  $region1: #{tpu_custom_call.1} parent=0
    #allocation3 [shape = 'u8[16384]{0}', space=vmem, size = 0x4000, scoped, tag = 'output window, operand 0, single buffered']
    #allocation4 [shape = 's32[1]{0}', space=sflag, size = 0x4, scoped, tag = 'scoped memory for tpu_custom_call.1']
    %9 = vsyncpa [#allocation4], 0
    // Predicated region
    $region2: #{tpu_custom_call.1} parent=1 // pred_check
      _
    $region3: #{tpu_custom_call.1} parent=1 // pred_check_branch
      %11 = sbr.rel (0) target = $region5
    $region4: #{tpu_custom_call.1} parent=1 // pred_region
      _
    $region5: #{tpu_custom_call.1} parent=1 // pred_fallthru
      _
    // Predicated region
    $region6: #{tpu_custom_call.1} parent=1 // pred_check
      _
    $region7: #{tpu_custom_call.1} parent=1 // pred_check_branch
      %13 = sbr.rel (0) target = $region9
    $region8: #{tpu_custom_call.1} parent=1 // pred_region
      _
    $region9: #{tpu_custom_call.1} parent=1 // pred_fallthru
      _
    // Predicated region
    $region10: #{tpu_custom_call.1} parent=1 // pred_check
      _
    $region11: #{tpu_custom_call.1} parent=1 // pred_check_branch
      %15 = sbr.rel (0) target = $region13
    $region12: #{tpu_custom_call.1} parent=1 // pred_region
      _
    $region13: #{tpu_custom_call.1} parent=1 // pred_fallthru
      _
    %v16 = vld [vmem:[%s0] sm:$0x3]
    %v17 = vld [vmem:[%s1] sm:$0xff]
    %v18 = vld [vmem:[%s1 + $0x8] sm:$0xff]
    %s19 = sld [smem:[#allocation2]]
    %v22 = vunpack.c.l.s4 1966171168
    %v23 = vunpack.c.0.s8 %v22
    %v24 = vlaneseq
    %v25 = vshrl.u32 %v24, 7
    %v26 = vsub.s32 %v23, %v25
    %v27 = vrot.slane %v16, %v26
    %v28 = vcombine.high %v27, %v27
    %v30 = vunpack.c.l.s4 1966171168
    %v31 = vunpack.c.0.s8 %v30
    %v32 = vlaneseq
    %v33 = vshrl.u32 %v32, 7
    %v34 = vsub.s32 %v31, %v33
    %v35 = vrot.slane %v27, %v34
    %v37 = vunpack.c.l.s4 1966171168
    %v38 = vunpack.c.0.s8 %v37
    %v39 = vlaneseq
    %v40 = vshrl.u32 %v39, 7
    %v41 = vsub.s32 %v38, %v40
    %v42 = vrot.slane %v28, %v41
    %v43 = vlaneseq
    %v44 = vshrl.u32 %v43, 7
    %v45 = vsub.s32 0, %v44
    %v46 = vrot.slane %v35, %v45
    %v47 = vlaneseq
    %v48 = vshrl.u32 %v47, 7
    %v49 = vsub.s32 0, %v48
    %v50 = vrot.slane %v42, %v49
    %54 = vset.pattern.permute.xlu0 0
    %55 = vperm.xlu0 %54, %v17
    %v56 = vpop.permute.xlu0 %55
    %59 = vset.pattern.permute.xlu0 0
    %60 = vperm.xlu0 %59, %v18
    %v61 = vpop.permute.xlu0 %60
    %v63 = vmul.f32 %v46, %v56
    %v64 = vmul.f32 %v46, %v61
    %v65 = vmul.f32 %v50, %v56
    %v66 = vmul.f32 %v50, %v61
    %v67 = vstv %s19
    %v68 = vadd.f32 %v63, %v67
    %v69 = vadd.f32 %v64, %v67
    %v70 = vadd.f32 %v65, %v67
    %v71 = vadd.f32 %v66, %v67
    %vm72 = vcmask 138240
    %73 = vst.msk [vmem:[#allocation3] sm:$0xff] %vm72, %v68
    %74 = vst.msk [vmem:[#allocation3 + $0x8] sm:$0xff] %vm72, %v69
    %75 = vst.msk [vmem:[#allocation3 + $0x10] sm:$0xff] %vm72, %v70
    %76 = vst.msk [vmem:[#allocation3 + $0x18] sm:$0xff] %vm72, %v71
    // Predicated region
    $region14: #{tpu_custom_call.1} parent=1 // pred_check
      _
    $region15: #{tpu_custom_call.1} parent=1 // pred_check_branch
      %78 = sbr.rel (0) target = $region17
    $region16: #{tpu_custom_call.1} parent=1 // pred_region
      %s80 = ssub.s32 512, 512
      %81 = vsyncadd [#allocation4], %s80
      %s82 = sshll.u32 [#allocation3], 4
      %s83 = int_to_ptr.vmem [resolvable:$true] %s82
      %88 = dma.vmem_to_hbm [thread:$0]  %s83, 512, %s3, [#allocation4], 128, 128, 8
    $region17: #{tpu_custom_call.1} parent=1 // pred_fallthru
      _
    // Predicated region
    $region18: #{tpu_custom_call.1} parent=1 // pred_check
      _
    $region19: #{tpu_custom_call.1} parent=1 // pred_check_branch
      %90 = sbr.rel (0) target = $region21
    $region20: #{tpu_custom_call.1} parent=1 // pred_region
      %91 = dma.done [#allocation4], 512
    $region21: #{tpu_custom_call.1} parent=1 // pred_fallthru
      _
    %92 = vsyncpa [#allocation4], 1

</llo_original>
